<compile_context>
chip_gen: v7x
topology: tpu7x:2x2x1
jax: 0.10.0
libtpu: 0.0.40
codegen_flags: <defaults>
</compile_context>

<pallas_src>
import jax
import jax.numpy as jnp
from jax.experimental import pallas as pl
from jax.experimental.pallas import tpu as pltpu

IN_FEATURES = 1
OUT_FEATURES = 1
LANES = 128          # vreg lane width
SUBLANES = 8         # vreg sublane count (f32)


def linear_fma_kernel(wb_ref, x_ref, o_ref):
    # wb_ref: SMEM (2,)  -> [weight, bias] scalars
    # x_ref:  VMEM (block_rows, 128) lane-dense slab of inputs
    # o_ref:  VMEM (block_rows, 128) matching output slab
    w = wb_ref[0]
    b = wb_ref[1]
    o_ref[...] = x_ref[...] * w + b


def linear_forward(x: jax.Array, weight: jax.Array, bias: jax.Array,
                   *, block_rows: int = 512) -> jax.Array:
    """y = x @ W^T + b for nn.Linear(1, 1). x: (N, 1) f32."""
    n, in_f = x.shape
    out_f = weight.shape[0]
    assert in_f == IN_FEATURES and out_f == OUT_FEATURES

    # Scalars [w, b] -> SMEM via scalar prefetch.
    wb = jnp.concatenate(
        [weight.reshape(1).astype(jnp.float32), bias.reshape(1).astype(jnp.float32)]
    )

    # Lane-dense layout: pad N and view as (rows_padded, 128).
    rows = pl.cdiv(max(n, 1), LANES)
    br = min(block_rows, SUBLANES * pl.cdiv(rows, SUBLANES))
    br = SUBLANES * pl.cdiv(br, SUBLANES)          # multiple of 8 sublanes
    rows_padded = br * pl.cdiv(rows, br)
    n_padded = rows_padded * LANES

    flat = jnp.pad(x.reshape(-1), (0, n_padded - n))
    x2d = flat.reshape(rows_padded, LANES)

    grid = (rows_padded // br,)
    out2d = pl.pallas_call(
        linear_fma_kernel,
        out_shape=jax.ShapeDtypeStruct((rows_padded, LANES), x.dtype),
        grid_spec=pltpu.PrefetchScalarGridSpec(
            num_scalar_prefetch=1,
            grid=grid,
            in_specs=[pl.BlockSpec((br, LANES), lambda i, wb: (i, 0))],
            out_specs=pl.BlockSpec((br, LANES), lambda i, wb: (i, 0)),
        ),
        compiler_params=pltpu.CompilerParams(
            dimension_semantics=("parallel",),
        ),
    )(wb, x2d)

    # Slice padded garbage rows off and restore (N, OUT_FEATURES).
    return out2d.reshape(-1)[:n].reshape(n, out_f)


if __name__ == "__main__":
    key = jax.random.PRNGKey(0)
    kx, kw, kb, kx2 = jax.random.split(key, 4)

    # Deterministic "parameter init" (matches nn.Linear(1, 1) shapes).
    weight = jax.random.normal(kw, (OUT_FEATURES, IN_FEATURES), dtype=jnp.float32)
    bias = jax.random.normal(kb, (OUT_FEATURES,), dtype=jnp.float32)

    # Small example input: batch of 8 samples, 1 feature each.
    x = jax.random.normal(kx, (8, IN_FEATURES), dtype=jnp.float32)
    y = linear_forward(x, weight, bias)
    jax.block_until_ready(y)
    y_ref = x @ weight.T + bias
    assert y.shape == (8, OUT_FEATURES)
    assert jnp.allclose(y, y_ref, atol=1e-5, rtol=1e-5)

    # Second check: N not a multiple of 128 exercises padding + grid slicing.
    x2 = jax.random.normal(kx2, (300, IN_FEATURES), dtype=jnp.float32)
    y2 = linear_forward(x2, weight, bias)
    jax.block_until_ready(y2)
    y2_ref = x2 @ weight.T + bias
    assert y2.shape == (300, OUT_FEATURES)
    assert jnp.allclose(y2, y2_ref, atol=1e-5, rtol=1e-5)

    print("KERNEL_OK")
</pallas_src>

<mosaic_0001>
module attributes {stable_mosaic.version = 11 : i64} {
  func.func @linear_fma_kernel(%arg0: i32, %arg1: memref<2xf32, #tpu.memory_space<smem>>, %arg2: memref<8x128xf32, #tpu.memory_space<vmem>>, %arg3: memref<8x128xf32, #tpu.memory_space<vmem>>) attributes {dimension_semantics = [#tpu.dimension_semantics<parallel>], iteration_bounds = array<i64: 1>, scalar_prefetch = 1 : i64, scratch_operands = 0 : i64, tpu.core_type = #tpu.core_type<tc>, window_params = [{transform_indices = @transform_0, window_bounds = array<i64: 8, 128>}, {transform_indices = @transform_1, window_bounds = array<i64: 8, 128>}]} {
    %c0 = arith.constant 0 : index
    %0 = memref.load %arg1[%c0] : memref<2xf32, #tpu.memory_space<smem>>
    %c1 = arith.constant 1 : index
    %1 = memref.load %arg1[%c1] : memref<2xf32, #tpu.memory_space<smem>>
    %c0_0 = arith.constant 0 : index
    %c0_1 = arith.constant 0 : index
    %2 = vector.load %arg2[%c0_0, %c0_1] : memref<8x128xf32, #tpu.memory_space<vmem>>, vector<8x128xf32>
    %3 = vector.broadcast %0 : f32 to vector<8x128xf32>
    %4 = arith.mulf %2, %3 : vector<8x128xf32>
    %5 = vector.broadcast %1 : f32 to vector<8x128xf32>
    %6 = arith.addf %4, %5 : vector<8x128xf32>
    %c0_2 = arith.constant 0 : index
    %c0_3 = arith.constant 0 : index
    %7 = vector.load %arg3[%c0_2, %c0_3] : memref<8x128xf32, #tpu.memory_space<vmem>>, vector<8x128xf32>
    tpu.vector_store %arg3[%c0_2, %c0_3], %6 {strides = array<i32>} : memref<8x128xf32, #tpu.memory_space<vmem>>, vector<8x128xf32>,
    return
  }
  func.func @transform_0(%arg0: i32, %arg1: memref<2xf32, #tpu.memory_space<smem>>) -> (i32, i32) {
    %c0_i32 = arith.constant 0 : i32
    %c0_i32_0 = arith.constant 0 : i32
    return %arg0, %c0_i32 : i32, i32
  }
  func.func @transform_1(%arg0: i32, %arg1: memref<2xf32, #tpu.memory_space<smem>>) -> (i32, i32) {
    %c0_i32 = arith.constant 0 : i32
    %c0_i32_0 = arith.constant 0 : i32
    return %arg0, %c0_i32 : i32, i32
  }
}

</mosaic_0001>

<llo_original>
// kernel: tpu_custom_call.1
$region0: #{tpu_custom_call.1}
  #allocation0 [shape = 'u32[]', space=smem, size = 0x4, offset = 0x4, fixed_abs, tag = 'smem constant byte address 0x4 - core index']
  #allocation1 [shape = 'u32[144,128]{1,0:T(1,128)}', space=vmem, size = 0x12000, scoped, tag = 'internal scratch']
  #allocation2 [shape = 's32[1]{0}', space=sflag, size = 0x4, scoped, tag = 'scoped memory for tpu_custom_call.1']
  #allocation3 [shape = 'u8[512]{0}', space=smem, size = 0x200, scoped, tag = 'prefetched SMEM operand 0']
  %s0 = inlined_call_operand.hbm [shape: f32[2], index: 0, kind: input, shape index: {}]
  %s1 = inlined_call_operand.hbm [shape: f32[8,128], index: 1, kind: input, shape index: {}]
  %s2 = inlined_call_operand.hbm [shape: f32[8,128], index: 2, kind: output, shape index: {}]
  %s3 = sld [smem:[#allocation0]]
  $region18: #{tpu_custom_call.1} parent=0
    _
  %s5 = ssub.s32 1, %s3
  %s6 = scalar_select 0, %s5, %s3
  %8 = dma.hbm_to_smem %s0, 16, [#allocation3], [#allocation2]
  %9 = dma.done [#allocation2], 16
  %10 = sfence
  $region1: #{tpu_custom_call.1} parent=0
    #allocation4 [shape = 'u8[4096]{0}', space=vmem, size = 0x1000, scoped, tag = 'input window, operand 1, single buffered']
    #allocation5 [shape = 's32[1]{0}', space=sflag, size = 0x4, scoped, tag = 'scoped memory for tpu_custom_call.1']
    #allocation6 [shape = 's32[1]{0}', space=sflag, size = 0x4, scoped, tag = 'scoped memory for tpu_custom_call.1']
    #allocation7 [shape = 'u8[4096]{0}', space=vmem, size = 0x1000, scoped, tag = 'output window, operand 0, single buffered']
    %11 = vsyncpa [#allocation5], 0
    %12 = vsyncpa [#allocation6], 0
    // Predicated region
    $region2: #{tpu_custom_call.1} parent=1 // pred_check
      _
    $region3: #{tpu_custom_call.1} parent=1 // pred_check_branch
      %14 = sbr.rel (0) target = $region5
    $region4: #{tpu_custom_call.1} parent=1 // pred_region
      %s16 = ssub.s32 128, 128
      %17 = vsyncadd [#allocation5], %s16
      %s19 = sshll.u32 [#allocation4], 4
      %s20 = int_to_ptr.vmem [resolvable:$true] %s19
      %22 = dma.hbm_to_vmem [thread:$0]  %s1, 128, %s20, [#allocation5]
    $region5: #{tpu_custom_call.1} parent=1 // pred_fallthru
      _
    // Predicated region
    $region6: #{tpu_custom_call.1} parent=1 // pred_check
      _
    $region7: #{tpu_custom_call.1} parent=1 // pred_check_branch
      %24 = sbr.rel (0) target = $region9
    $region8: #{tpu_custom_call.1} parent=1 // pred_region
      %25 = dma.done [#allocation5], 128
    $region9: #{tpu_custom_call.1} parent=1 // pred_fallthru
      _
    %s26 = sld [smem:[#allocation3]]
    %s27 = sld [smem:[#allocation3 + $0x1]]
    %v28 = vld [vmem:[#allocation4] sm:$0xff]
    %v29 = vstv %s26
    %v30 = vmul.f32 %v28, %v29
    %v31 = vstv %s27
    %v32 = vadd.f32 %v30, %v31
    %33 = vst [vmem:[#allocation7] sm:$0xff] %v32
    // Predicated region
    $region10: #{tpu_custom_call.1} parent=1 // pred_check
      _
    $region11: #{tpu_custom_call.1} parent=1 // pred_check_branch
      %35 = sbr.rel (0) target = $region13
    $region12: #{tpu_custom_call.1} parent=1 // pred_region
      %s37 = ssub.s32 128, 128
      %38 = vsyncadd [#allocation6], %s37
      %s40 = sshll.u32 [#allocation7], 4
      %s41 = int_to_ptr.vmem [resolvable:$true] %s40
      %43 = dma.vmem_to_hbm [thread:$0]  %s41, 128, %s2, [#allocation6]
    $region13: #{tpu_custom_call.1} parent=1 // pred_fallthru
      _
    // Predicated region
    $region14: #{tpu_custom_call.1} parent=1 // pred_check
      _
    $region15: #{tpu_custom_call.1} parent=1 // pred_check_branch
      %45 = sbr.rel (0) target = $region17
    $region16: #{tpu_custom_call.1} parent=1 // pred_region
      %46 = dma.done [#allocation6], 128
    $region17: #{tpu_custom_call.1} parent=1 // pred_fallthru
      _
    %47 = vsyncpa [#allocation5], 1
    %48 = vsyncpa [#allocation6], 1

</llo_original>
